<compile_context>
chip_gen: v5e
topology: v5e:2x2
jax: 0.10.0
libtpu: 0.0.40
codegen_flags: <defaults>
</compile_context>

<pallas_src>
import functools

import jax
import jax.numpy as jnp
import numpy as np
from jax import lax
from jax.experimental import pallas as pl
from jax.experimental.pallas import tpu as pltpu


def _erf(x):
    # Abramowitz & Stegun 7.1.26, max abs error ~1.5e-7 (exp/mul/div/where only).
    a1 = 0.254829592
    a2 = -0.284496736
    a3 = 1.421413741
    a4 = -1.453152027
    a5 = 1.061405429
    p = 0.3275911
    z = jnp.abs(x)
    t = 1.0 / (1.0 + p * z)
    poly = ((((a5 * t + a4) * t + a3) * t + a2) * t + a1) * t
    y = 1.0 - poly * jnp.exp(-z * z)
    return jnp.where(x < 0.0, -y, y)


def _gelu_exact(x):
    # torch.nn.GELU() default: 0.5 * x * (1 + erf(x / sqrt(2)))
    return 0.5 * x * (1.0 + _erf(x * 0.7071067811865475))


def _mlp_kernel_single_k(x_ref, w_ref, b_ref, o_ref):
    # Whole K in one tile: matmul -> bias -> GELU -> store, no scratch.
    z = jnp.dot(x_ref[...], w_ref[...], preferred_element_type=jnp.float32)
    z = z + b_ref[...]                       # (tm, tn) + (1, tn) broadcast
    o_ref[...] = _gelu_exact(z).astype(o_ref.dtype)


def _mlp_kernel_multi_k(x_ref, w_ref, b_ref, o_ref, acc_ref):
    k = pl.program_id(2)

    @pl.when(k == 0)
    def _():
        acc_ref[...] = jnp.zeros_like(acc_ref)

    acc_ref[...] += jnp.dot(x_ref[...], w_ref[...],
                            preferred_element_type=jnp.float32)

    @pl.when(k == pl.num_programs(2) - 1)
    def _():
        z = acc_ref[...] + b_ref[...]        # (tm, tn) + (1, tn) broadcast
        o_ref[...] = _gelu_exact(z).astype(o_ref.dtype)


def _round_up(v, m):
    return (v + m - 1) // m * m


@functools.partial(jax.jit, static_argnames=("tm", "tn", "tk"))
def mlp_forward(x, w, b, *, tm=256, tn=512, tk=512):
    """MLP forward (eval mode): GELU(x @ w + b).

    x: (..., n_in); w: (n_in, n_out) == torch linear.weight.T; b: (n_out,).
    """
    lead = x.shape[:-1]
    K = x.shape[-1]
    Kw, N = w.shape
    assert Kw == K, f"shape mismatch: x has K={K}, w has K={Kw}"
    M = int(np.prod(lead)) if lead else 1

    # MXU compute dtype: native input dtype (bf16 stays bf16), f32 accumulate.
    compute_dtype = jnp.result_type(x.dtype, w.dtype)
    out_dtype = x.dtype

    x2 = x.reshape(M, K)
    if x2.dtype != compute_dtype:
        x2 = x2.astype(compute_dtype)
    wc = w if w.dtype == compute_dtype else w.astype(compute_dtype)
    bc = b.astype(jnp.float32).reshape(1, N)

    # Clamp tiles to the (8, 128)-aligned problem size, then pad only if needed.
    tm = min(tm, _round_up(M, 8))
    tn = min(tn, _round_up(N, 128))
    tk = min(tk, _round_up(K, 128))
    Mp, Np, Kp = _round_up(M, tm), _round_up(N, tn), _round_up(K, tk)

    if (Mp, Kp) != (M, K):
        x2 = jnp.pad(x2, ((0, Mp - M), (0, Kp - K)))
    if (Kp, Np) != (K, N):
        wc = jnp.pad(wc, ((0, Kp - K), (0, Np - N)))
    if Np != N:
        bc = jnp.pad(bc, ((0, 0), (0, Np - N)))

    n_k = Kp // tk

    if n_k == 1:
        # Fast path: K fits in a single tile -> 2-D grid, no accumulator.
        out = pl.pallas_call(
            _mlp_kernel_single_k,
            out_shape=jax.ShapeDtypeStruct((Mp, Np), out_dtype),
            grid_spec=pltpu.PrefetchScalarGridSpec(
                num_scalar_prefetch=0,
                grid=(Mp // tm, Np // tn),
                in_specs=[
                    pl.BlockSpec((tm, tk), lambda i, j: (i, 0)),   # x tile
                    pl.BlockSpec((tk, tn), lambda i, j: (0, j)),   # w tile
                    pl.BlockSpec((1, tn), lambda i, j: (0, j)),    # bias tile
                ],
                out_specs=pl.BlockSpec((tm, tn), lambda i, j: (i, j)),
            ),
            compiler_params=pltpu.CompilerParams(
                dimension_semantics=("parallel", "parallel"),
            ),
        )(x2, wc, bc)
    else:
        # General path: reduction over K tiles, accumulator in VMEM scratch.
        out = pl.pallas_call(
            _mlp_kernel_multi_k,
            out_shape=jax.ShapeDtypeStruct((Mp, Np), out_dtype),
            grid_spec=pltpu.PrefetchScalarGridSpec(
                num_scalar_prefetch=0,
                grid=(Mp // tm, Np // tn, n_k),
                in_specs=[
                    pl.BlockSpec((tm, tk), lambda i, j, k: (i, k)),   # x tile
                    pl.BlockSpec((tk, tn), lambda i, j, k: (k, j)),   # w tile
                    pl.BlockSpec((1, tn), lambda i, j, k: (0, j)),    # bias tile
                ],
                out_specs=pl.BlockSpec((tm, tn), lambda i, j, k: (i, j)),
                scratch_shapes=[pltpu.VMEM((tm, tn), jnp.float32)],
            ),
            compiler_params=pltpu.CompilerParams(
                dimension_semantics=("parallel", "parallel", "arbitrary"),
            ),
        )(x2, wc, bc)

    if (Mp, Np) != (M, N):
        out = out[:M, :N]
    return out.reshape(*lead, N)


if __name__ == "__main__":
    # Small deterministic example consistent with the module: a token stream
    # (batch=2, seq=8) with n_in=16 features mapped to n_out=32.
    B, S, n_in, n_out = 2, 8, 16, 32
    key = jax.random.PRNGKey(0)
    kx, kw, kb = jax.random.split(key, 3)

    x = jax.random.normal(kx, (B, S, n_in), jnp.float32)
    bound = 1.0 / float(np.sqrt(n_in))          # nn.Linear default init range
    w = jax.random.uniform(kw, (n_in, n_out), jnp.float32, -bound, bound)
    b = jax.random.uniform(kb, (n_out,), jnp.float32, -bound, bound)

    out = mlp_forward(x, w, b)
    out = jax.block_until_ready(out)
    assert out.shape == (B, S, n_out)

    # Pure-JAX reference: eval-mode dropout = identity; exact (erf) GELU.
    z = jnp.einsum("bsk,kn->bsn", x, w, precision=lax.Precision.HIGHEST) + b
    ref = jax.nn.gelu(z, approximate=False)
    np.testing.assert_allclose(np.asarray(out), np.asarray(ref),
                               rtol=1e-4, atol=1e-4)

    # Also exercise the multi-K-tile (accumulator) path with a larger hidden dim.
    n_in2, n_out2 = 384, 256
    x2 = jax.random.normal(kx, (B, S, n_in2), jnp.float32)
    w2 = jax.random.uniform(kw, (n_in2, n_out2), jnp.float32, -0.05, 0.05)
    b2 = jax.random.uniform(kb, (n_out2,), jnp.float32, -0.05, 0.05)
    out2 = jax.block_until_ready(mlp_forward(x2, w2, b2, tk=128))
    z2 = jnp.einsum("bsk,kn->bsn", x2, w2, precision=lax.Precision.HIGHEST) + b2
    ref2 = jax.nn.gelu(z2, approximate=False)
    np.testing.assert_allclose(np.asarray(out2), np.asarray(ref2),
                               rtol=1e-4, atol=1e-4)

    print("KERNEL_OK")
</pallas_src>

<mosaic_0001>
module attributes {stable_mosaic.version = 11 : i64} {
  func.func @_mlp_kernel_single_k(%arg0: i32, %arg1: i32, %arg2: memref<16x128xf32, #tpu.memory_space<vmem>>, %arg3: memref<128x128xf32, #tpu.memory_space<vmem>>, %arg4: memref<1x128xf32, #tpu.memory_space<vmem>>, %arg5: memref<16x128xf32, #tpu.memory_space<vmem>>) attributes {dimension_semantics = [#tpu.dimension_semantics<parallel>, #tpu.dimension_semantics<parallel>], iteration_bounds = array<i64: 1, 1>, scalar_prefetch = 0 : i64, scratch_operands = 0 : i64, tpu.core_type = #tpu.core_type<tc>, window_params = [{transform_indices = @transform_0, window_bounds = array<i64: 16, 128>}, {transform_indices = @transform_1, window_bounds = array<i64: 128, 128>}, {transform_indices = @transform_2, window_bounds = array<i64: 1, 128>}, {transform_indices = @transform_3, window_bounds = array<i64: 16, 128>}]} {
    %c0 = arith.constant 0 : index
    %c0_0 = arith.constant 0 : index
    %0 = vector.load %arg2[%c0, %c0_0] : memref<16x128xf32, #tpu.memory_space<vmem>>, vector<16x128xf32>
    %c0_1 = arith.constant 0 : index
    %c0_2 = arith.constant 0 : index
    %1 = vector.load %arg3[%c0_1, %c0_2] : memref<128x128xf32, #tpu.memory_space<vmem>>, vector<128x128xf32>
    %cst = arith.constant dense<0.000000e+00> : vector<16x128xf32>
    %2 = tpu.matmul %0, %1, %cst {dimension_numbers = #tpu.dot_dimension_numbers<[1], [0], [0], [1], [0, 0, 1, 1], [], []>} : vector<16x128xf32>, vector<128x128xf32>, vector<16x128xf32> -> vector<16x128xf32>
    %c0_3 = arith.constant 0 : index
    %c0_4 = arith.constant 0 : index
    %3 = vector.load %arg4[%c0_3, %c0_4] : memref<1x128xf32, #tpu.memory_space<vmem>>, vector<1x128xf32>
    %4 = vector.broadcast %3 : vector<1x128xf32> to vector<16x128xf32>
    %5 = arith.addf %2, %4 : vector<16x128xf32>
    %cst_5 = arith.constant 5.000000e-01 : f32
    %6 = vector.broadcast %cst_5 : f32 to vector<16x128xf32>
    %7 = arith.mulf %6, %5 : vector<16x128xf32>
    %cst_6 = arith.constant 0.707106769 : f32
    %8 = vector.broadcast %cst_6 : f32 to vector<16x128xf32>
    %9 = arith.mulf %5, %8 : vector<16x128xf32>
    %10 = math.absf %9 : vector<16x128xf32>
    %cst_7 = arith.constant 0.327591091 : f32
    %11 = vector.broadcast %cst_7 : f32 to vector<16x128xf32>
    %12 = arith.mulf %11, %10 : vector<16x128xf32>
    %cst_8 = arith.constant 1.000000e+00 : f32
    %13 = vector.broadcast %cst_8 : f32 to vector<16x128xf32>
    %14 = arith.addf %13, %12 : vector<16x128xf32>
    %cst_9 = arith.constant 1.000000e+00 : f32
    %15 = vector.broadcast %cst_9 : f32 to vector<16x128xf32>
    %16 = arith.divf %15, %14 : vector<16x128xf32>
    %cst_10 = arith.constant 1.06140542 : f32
    %17 = vector.broadcast %cst_10 : f32 to vector<16x128xf32>
    %18 = arith.mulf %17, %16 : vector<16x128xf32>
    %cst_11 = arith.constant -1.45315206 : f32
    %19 = vector.broadcast %cst_11 : f32 to vector<16x128xf32>
    %20 = arith.addf %18, %19 : vector<16x128xf32>
    %21 = arith.mulf %20, %16 : vector<16x128xf32>
    %cst_12 = arith.constant 1.42141378 : f32
    %22 = vector.broadcast %cst_12 : f32 to vector<16x128xf32>
    %23 = arith.addf %21, %22 : vector<16x128xf32>
    %24 = arith.mulf %23, %16 : vector<16x128xf32>
    %cst_13 = arith.constant -0.284496725 : f32
    %25 = vector.broadcast %cst_13 : f32 to vector<16x128xf32>
    %26 = arith.addf %24, %25 : vector<16x128xf32>
    %27 = arith.mulf %26, %16 : vector<16x128xf32>
    %cst_14 = arith.constant 0.254829586 : f32
    %28 = vector.broadcast %cst_14 : f32 to vector<16x128xf32>
    %29 = arith.addf %27, %28 : vector<16x128xf32>
    %30 = arith.mulf %29, %16 : vector<16x128xf32>
    %cst_15 = arith.constant 0.000000e+00 : f32
    %31 = vector.broadcast %cst_15 : f32 to vector<16x128xf32>
    %32 = arith.subf %31, %10 : vector<16x128xf32>
    %33 = arith.mulf %32, %10 : vector<16x128xf32>
    %34 = math.exp %33 : vector<16x128xf32>
    %35 = arith.mulf %30, %34 : vector<16x128xf32>
    %cst_16 = arith.constant 1.000000e+00 : f32
    %36 = vector.broadcast %cst_16 : f32 to vector<16x128xf32>
    %37 = arith.subf %36, %35 : vector<16x128xf32>
    %cst_17 = arith.constant 0.000000e+00 : f32
    %38 = vector.broadcast %cst_17 : f32 to vector<16x128xf32>
    %39 = arith.cmpf olt, %9, %38 : vector<16x128xf32>
    %cst_18 = arith.constant 0.000000e+00 : f32
    %40 = vector.broadcast %cst_18 : f32 to vector<16x128xf32>
    %41 = arith.subf %40, %37 : vector<16x128xf32>
    %42 = arith.select %39, %41, %37 : vector<16x128xi1>, vector<16x128xf32>
    %cst_19 = arith.constant 1.000000e+00 : f32
    %43 = vector.broadcast %cst_19 : f32 to vector<16x128xf32>
    %44 = arith.addf %43, %42 : vector<16x128xf32>
    %45 = arith.mulf %7, %44 : vector<16x128xf32>
    %c0_20 = arith.constant 0 : index
    %c0_21 = arith.constant 0 : index
    %46 = vector.load %arg5[%c0_20, %c0_21] : memref<16x128xf32, #tpu.memory_space<vmem>>, vector<16x128xf32>
    tpu.vector_store %arg5[%c0_20, %c0_21], %45 {strides = array<i32>} : memref<16x128xf32, #tpu.memory_space<vmem>>, vector<16x128xf32>,
    return
  }
  func.func @transform_0(%arg0: i32, %arg1: i32) -> (i32, i32) {
    %c0_i32 = arith.constant 0 : i32
    %c0_i32_0 = arith.constant 0 : i32
    return %arg0, %c0_i32 : i32, i32
  }
  func.func @transform_1(%arg0: i32, %arg1: i32) -> (i32, i32) {
    %c0_i32 = arith.constant 0 : i32
    %c0_i32_0 = arith.constant 0 : i32
    return %c0_i32, %arg1 : i32, i32
  }
  func.func @transform_2(%arg0: i32, %arg1: i32) -> (i32, i32) {
    %c0_i32 = arith.constant 0 : i32
    %c0_i32_0 = arith.constant 0 : i32
    return %c0_i32, %arg1 : i32, i32
  }
  func.func @transform_3(%arg0: i32, %arg1: i32) -> (i32, i32) {
    %c0_i32 = arith.constant 0 : i32
    return %arg0, %arg1 : i32, i32
  }
}

</mosaic_0001>

<llo_original>
// kernel: mlp_forward.1
$region0: #{mlp_forward.1}
  #allocation0 [shape = 'u32[]', space=smem, size = 0x4, offset = 0x4, fixed_abs, tag = 'smem constant byte address 0x4 - core index']
  #allocation1 [shape = 'u32[72,128]{1,0:T(1,128)}', space=vmem, size = 0x9000, scoped, tag = 'internal scratch']
  %s0 = inlined_call_operand.vmem [shape: f32[16,128], index: 0, kind: input, shape index: {}]
  %s1 = inlined_call_operand.vmem [shape: f32[128,128], index: 1, kind: input, shape index: {}]
  %s2 = inlined_call_operand.vmem [shape: f32[1,128], index: 2, kind: input, shape index: {}]
  %s3 = inlined_call_operand.vmem [shape: f32[16,128], index: 3, kind: output, shape index: {}]
  %s4 = sld [smem:[#allocation0]]
  $region22: #{mlp_forward.1} parent=0
    _
  %s6 = ssub.s32 1, %s4
  %s7 = scalar_select 0, %s6, %s4
  // Predicated region
  $region2: #{mlp_forward.1} parent=0 // pred_check
    _
  $region3: #{mlp_forward.1} parent=0 // pred_check_branch
    %9 = sbr.rel (0) target = $region5
  $region4: #{mlp_forward.1} parent=0 // pred_region
    _
  $region5: #{mlp_forward.1} parent=0 // pred_fallthru
    _
  // Predicated region
  $region6: #{mlp_forward.1} parent=0 // pred_check
    _
  $region7: #{mlp_forward.1} parent=0 // pred_check_branch
    %11 = sbr.rel (0) target = $region9
  $region8: #{mlp_forward.1} parent=0 // pred_region
    _
  $region9: #{mlp_forward.1} parent=0 // pred_fallthru
    _
  // Predicated region
  $region10: #{mlp_forward.1} parent=0 // pred_check
    _
  $region11: #{mlp_forward.1} parent=0 // pred_check_branch
    %13 = sbr.rel (0) target = $region13
  $region12: #{mlp_forward.1} parent=0 // pred_region
    _
  $region13: #{mlp_forward.1} parent=0 // pred_fallthru
    _
  %v14 = vld [vmem:[%s0] sm:$0xff]
  %v15 = vld [vmem:[%s0 + $0x8] sm:$0xff]
  %v16 = vld [vmem:[%s1] sm:$0xff]
  %v17 = vld [vmem:[%s1 + $0x8] sm:$0xff]
  %v18 = vld [vmem:[%s1 + $0x10] sm:$0xff]
  %v19 = vld [vmem:[%s1 + $0x18] sm:$0xff]
  %v20 = vld [vmem:[%s1 + $0x20] sm:$0xff]
  %v21 = vld [vmem:[%s1 + $0x28] sm:$0xff]
  %v22 = vld [vmem:[%s1 + $0x30] sm:$0xff]
  %v23 = vld [vmem:[%s1 + $0x38] sm:$0xff]
  %v24 = vld [vmem:[%s1 + $0x40] sm:$0xff]
  %v25 = vld [vmem:[%s1 + $0x48] sm:$0xff]
  %v26 = vld [vmem:[%s1 + $0x50] sm:$0xff]
  %v27 = vld [vmem:[%s1 + $0x58] sm:$0xff]
  %v28 = vld [vmem:[%s1 + $0x60] sm:$0xff]
  %v29 = vld [vmem:[%s1 + $0x68] sm:$0xff]
  %v30 = vld [vmem:[%s1 + $0x70] sm:$0xff]
  %v31 = vld [vmem:[%s1 + $0x78] sm:$0xff]
  %v32 = vld [vmem:[%s2] sm:$0x1]
  %v34 = vperm.slane %v32, 0
  %36 = vmatpush.msra.mxu0 %v31
  %37 = vmatpush.msra.mxu0 %v30
  %38 = vmatpush.msra.mxu0 %v29
  %39 = vmatpush.msra.mxu0 %v28
  %40 = vmatpush.msra.mxu0 %v27
  %41 = vmatpush.msra.mxu0 %v26
  %42 = vmatpush.msra.mxu0 %v25
  %43 = vmatpush.msra.mxu0 %v24
  %44 = vmatpush.msra.mxu0 %v23
  %45 = vmatpush.msra.mxu0 %v22
  %46 = vmatpush.msra.mxu0 %v21
  %47 = vmatpush.msra.mxu0 %v20
  %48 = vmatpush.msra.mxu0 %v19
  %49 = vmatpush.msra.mxu0 %v18
  %50 = vmatpush.msra.mxu0 %v17
  %51 = vmatpush.msra.mxu0 %v16
  %52 = vmatmul.f32.gmra.mxu0 %v14
  %v53 = vpop.f32.mrf.mxu0
  %v54 = vadd.f32 %v34, %v53
  %55 = vmatmul.f32.gmra.mxu0 %v15
  %v56 = vpop.f32.mrf.mxu0
  %v57 = vadd.f32 %v34, %v56
  %58 = vdwg.mxu0
  %v59 = vmul.f32 %v54, 0.5
  %v60 = vmul.f32 %v57, 0.5
  %v61 = vmul.f32 %v54, 0.70710677
  %v62 = vmul.f32 %v57, 0.70710677
  %v63 = vand.u32 2147483647, %v61
  %v64 = vand.u32 2147483647, %v62
  %v65 = vmul.f32 %v63, 0.3275911
  %v66 = vmul.f32 %v64, 0.3275911
  %v67 = vadd.f32 %v65, 1.0
  %v68 = vadd.f32 %v66, 1.0
  %v69 = vrcp.pop %v67
  %v70 = vmul.f32 %v67, %v69
  %v71 = vsub.f32 1.0, %v70
  %v72 = vmul.f32 %v69, %v71
  %v73 = vadd.f32 %v69, %v72
  %vm74 = vweird.f32 %v67
  %vm75 = vweird.f32 %v69
  %vm76 = vmor %vm74, %vm75
  %v77 = vsel %vm76, %v69, %v73
  %v78 = vand.u32 2147483647, %v67
  %vm79 = vcmp.eq.f32.partialorder %v78, 8.507059e+37
  %v80 = vand.u32 %v67, 2147483648
  %v81 = vor.u32 1.1754944e-38, %v80
  %v82 = vsel %vm79, %v81, %v77
  %v83 = vmul.f32 1.0, %v82
  %v84 = vrcp.pop %v68
  %v85 = vmul.f32 %v68, %v84
  %v86 = vsub.f32 1.0, %v85
  %v87 = vmul.f32 %v84, %v86
  %v88 = vadd.f32 %v84, %v87
  %vm89 = vweird.f32 %v68
  %vm90 = vweird.f32 %v84
  %vm91 = vmor %vm89, %vm90
  %v92 = vsel %vm91, %v84, %v88
  %v93 = vand.u32 2147483647, %v68
  %vm94 = vcmp.eq.f32.partialorder %v93, 8.507059e+37
  %v95 = vand.u32 %v68, 2147483648
  %v96 = vor.u32 1.1754944e-38, %v95
  %v97 = vsel %vm94, %v96, %v92
  %v98 = vmul.f32 1.0, %v97
  %v99 = vmul.f32 %v83, 1.0614054
  %v100 = vmul.f32 %v98, 1.0614054
  %v101 = vadd.f32 %v99, -1.4531521
  %v102 = vadd.f32 %v100, -1.4531521
  %v103 = vmul.f32 %v101, %v83
  %v104 = vmul.f32 %v102, %v98
  %v105 = vadd.f32 %v103, 1.4214138
  %v106 = vadd.f32 %v104, 1.4214138
  %v107 = vmul.f32 %v105, %v83
  %v108 = vmul.f32 %v106, %v98
  %v109 = vadd.f32 %v107, -0.28449672
  %v110 = vadd.f32 %v108, -0.28449672
  %v111 = vmul.f32 %v109, %v83
  %v112 = vmul.f32 %v110, %v98
  %v113 = vadd.f32 %v111, 0.2548296
  %v114 = vadd.f32 %v112, 0.2548296
  %v115 = vmul.f32 %v113, %v83
  %v116 = vmul.f32 %v114, %v98
  %v117 = vsub.f32 0.0, %v63
  %v118 = vsub.f32 0.0, %v64
  %v119 = vmul.f32 %v117, %v63
  %v120 = vmul.f32 %v118, %v64
  %v121 = vmul.f32 %v119, 1.442695
  %v122 = vpow.pop %v121
  %v123 = vmul.f32 %v120, 1.442695
  %v124 = vpow.pop %v123
  %v125 = vmul.f32 %v115, %v122
  %v126 = vmul.f32 %v116, %v124
  %v127 = vsub.f32 1.0, %v125
  %v128 = vsub.f32 1.0, %v126
  %vm129 = vcmp.lt.f32.partialorder %v61, 0.0
  %vm130 = vcmp.lt.f32.partialorder %v62, 0.0
  %v131 = vsub.f32 0.0, %v127
  %v132 = vsub.f32 0.0, %v128
  %v133 = vsel %vm129, %v131, %v127
  %v134 = vsel %vm130, %v132, %v128
  %v135 = vadd.f32 %v133, 1.0
  %v136 = vadd.f32 %v134, 1.0
  %v137 = vmul.f32 %v59, %v135
  %v138 = vmul.f32 %v60, %v136
  %139 = vst [vmem:[%s3] sm:$0xff] %v137
  %140 = vst [vmem:[%s3 + $0x8] sm:$0xff] %v138
  // Predicated region
  $region14: #{mlp_forward.1} parent=0 // pred_check
    _
  $region15: #{mlp_forward.1} parent=0 // pred_check_branch
    %142 = sbr.rel (0) target = $region17
  $region16: #{mlp_forward.1} parent=0 // pred_region
    _
  $region17: #{mlp_forward.1} parent=0 // pred_fallthru
    _
  // Predicated region
  $region18: #{mlp_forward.1} parent=0 // pred_check
    _
  $region19: #{mlp_forward.1} parent=0 // pred_check_branch
    %144 = sbr.rel (0) target = $region21
  $region20: #{mlp_forward.1} parent=0 // pred_region
    _
  $region21: #{mlp_forward.1} parent=0 // pred_fallthru
    _

</llo_original>
